<compile_context>
chip_gen: v6e
topology: v6e:2x2x1
jax: 0.10.0
libtpu: 0.0.40
codegen_flags: <defaults>
</compile_context>

<pallas_src>
import functools

import jax
import jax.numpy as jnp
from jax import lax
from jax.experimental import pallas as pl
from jax.experimental.pallas import tpu as pltpu


EPS = 1e-5          # nn.InstanceNorm2d default eps
NEG_SLOPE = 0.2     # LeakyReLU slope


def _dblock_kernel(z_ref, w_ref, g_ref, b_ref, m_ref, o_ref, *, Ho, Wo, Wp2):
    # z_ref: (1, 4*C_in, Hp2*Wp2) bf16   space-to-depth input, spatial flattened on lanes
    # w_ref: (4, C_out, 4*C_in) bf16     one (C_out, 4*C_in) weight slab per 2x2 shift
    # g_ref, b_ref: (C_out, 1) f32       InstanceNorm affine params
    # m_ref: (1, R) f32                  1.0 on valid fused-spatial columns, 0.0 on junk
    # o_ref: (1, C_out, Ho*Wo) f32
    R = Ho * Wp2 - 1
    P = Ho * Wo
    z = z_ref[0]                                     # (4*C_in, S) bf16

    # Conv as 4 accumulated MXU matmuls over statically shifted flattened-spatial slices.
    acc = None
    for q, off in enumerate((0, 1, Wp2, Wp2 + 1)):   # (qh, qw) in row-major order
        contrib = jnp.dot(w_ref[q], z[:, off:off + R],
                          preferred_element_type=jnp.float32)
        acc = contrib if acc is None else acc + contrib        # (C_out, R) f32

    # InstanceNorm statistics over the P valid spatial positions (junk columns masked).
    acc = acc * m_ref[...]
    inv_p = 1.0 / P
    mean = jnp.sum(acc, axis=1, keepdims=True) * inv_p                      # (C_out, 1)
    var = jnp.sum(acc * acc, axis=1, keepdims=True) * inv_p - mean * mean   # E[y^2]-m^2
    inv_std = lax.rsqrt(jnp.maximum(var, 0.0) + EPS)                        # EUP

    # Fused normalize + affine + LeakyReLU(0.2), single multiply-add pass.
    scale = g_ref[...] * inv_std
    shift = b_ref[...] - mean * scale
    y = acc * scale + shift
    y = jnp.maximum(y, NEG_SLOPE * y)

    # Compact the (C_out, R) fused-spatial result (Wo valid + 1 junk column per output
    # row) into the dense (C_out, Ho*Wo) output block.  Static lane slices only.
    for h in range(Ho):
        o_ref[0, :, h * Wo:(h + 1) * Wo] = y[:, h * Wp2:h * Wp2 + Wo]


def dblock_forward(x, weight, gamma, beta, stride=2):
    """x: (N, C_in, H, W); weight: (C_out, C_in, 4, 4); gamma/beta: (C_out,)."""
    if stride != 2:
        raise NotImplementedError("this kernel implements the stride=2 DBlock")
    K, pad = 4, 1
    N, C_in, H, W = x.shape
    C_out = weight.shape[0]
    assert H % 2 == 0 and W % 2 == 0, "even spatial dims expected for k=4/s=2/pad=1"
    Hp, Wp = H + 2 * pad, W + 2 * pad
    Hp2, Wp2 = Hp // 2, Wp // 2
    Ho, Wo = Hp2 - 1, Wp2 - 1                       # = (Hp - K)//2 + 1
    P, S, R, C4 = Ho * Wo, Hp2 * Wp2, Ho * Wp2 - 1, 4 * C_in

    # bf16 cast FIRST, then reflect pad and space-to-depth:
    #   z[n, (ph,pw,c), h2*Wp2 + w2] = x_pad[n, c, 2*h2 + ph, 2*w2 + pw]
    xb = x.astype(jnp.bfloat16)
    xp = jnp.pad(xb, ((0, 0), (0, 0), (pad, pad), (pad, pad)), mode="reflect")
    z = xp.reshape(N, C_in, Hp2, 2, Wp2, 2).transpose(0, 3, 5, 1, 2, 4)
    z = z.reshape(N, C4, S)

    # Weight -> one (C_out, 4*C_in) slab per (qh, qw) shift; kh = 2*qh+ph, kw = 2*qw+pw.
    w2 = weight.astype(jnp.bfloat16).reshape(C_out, C_in, 2, 2, 2, 2)
    w2 = w2.transpose(2, 4, 0, 3, 5, 1).reshape(4, C_out, C4)

    g = gamma.astype(jnp.float32).reshape(C_out, 1)
    b = beta.astype(jnp.float32).reshape(C_out, 1)

    # Fused-spatial column r = oh*Wp2 + ow is a real output position iff ow < Wo.
    ridx = jnp.arange(R, dtype=jnp.int32)
    mask = ((ridx % Wp2) < Wo).astype(jnp.float32).reshape(1, R)

    # VMEM budget: double-buffered z/out blocks + resident weights/params + f32 temps,
    # clamped to a fraction of the physical per-core VMEM of the current chip.
    block_bytes = (2 * C4 * S * 2 + 2 * C_out * P * 4
                   + 4 * C_out * C4 * 2 + 2 * C_out * 4 + R * 4)
    temp_bytes = 3 * C_out * R * 4
    try:
        vmem_cap = int(pltpu.get_tpu_info().vmem_capacity_bytes)
    except Exception:
        vmem_cap = 128 * 1024 * 1024
    vmem_limit = int(min(max(32 * 1024 * 1024, 2 * (block_bytes + temp_bytes)),
                         int(vmem_cap * 0.8)))

    kernel = functools.partial(_dblock_kernel, Ho=Ho, Wo=Wo, Wp2=Wp2)

    out = pl.pallas_call(
        kernel,
        out_shape=jax.ShapeDtypeStruct((N, C_out, P), jnp.float32),
        grid_spec=pltpu.PrefetchScalarGridSpec(
            num_scalar_prefetch=0,
            grid=(N,),
            in_specs=[
                pl.BlockSpec((1, C4, S), lambda n: (n, 0, 0)),
                pl.BlockSpec((4, C_out, C4), lambda n: (0, 0, 0)),
                pl.BlockSpec((C_out, 1), lambda n: (0, 0)),
                pl.BlockSpec((C_out, 1), lambda n: (0, 0)),
                pl.BlockSpec((1, R), lambda n: (0, 0)),
            ],
            out_specs=pl.BlockSpec((1, C_out, P), lambda n: (n, 0, 0)),
        ),
        compiler_params=pltpu.CompilerParams(
            dimension_semantics=("parallel",),
            vmem_limit_bytes=vmem_limit,
        ),
        cost_estimate=pl.CostEstimate(
            flops=2 * N * 4 * C_out * C4 * R,
            transcendentals=N * C_out,
            bytes_accessed=(N * C4 * S * 2 + 4 * C_out * C4 * 2
                            + 2 * C_out * 4 + R * 4 + N * C_out * P * 4),
        ),
    )(z, w2, g, b, mask)

    # (N, C_out, Ho*Wo) -> NCHW: pure reshape, no transpose, no padding slice.
    return out.reshape(N, C_out, Ho, Wo)


def _reference(x, weight, gamma, beta, stride=2):
    """Pure-JAX reference matching the PyTorch module (conv inputs quantized to bf16,
    matching what the kernel feeds the MXU)."""
    xq = x.astype(jnp.bfloat16).astype(jnp.float32)
    wq = weight.astype(jnp.bfloat16).astype(jnp.float32)
    xp = jnp.pad(xq, ((0, 0), (0, 0), (1, 1), (1, 1)), mode="reflect")
    y = lax.conv_general_dilated(
        xp, wq, window_strides=(stride, stride), padding="VALID",
        dimension_numbers=("NCHW", "OIHW", "NCHW"))
    mean = jnp.mean(y, axis=(2, 3), keepdims=True)
    var = jnp.mean((y - mean) ** 2, axis=(2, 3), keepdims=True)
    yn = (y - mean) / jnp.sqrt(var + EPS)
    ya = yn * gamma.reshape(1, -1, 1, 1) + beta.reshape(1, -1, 1, 1)
    return jnp.where(ya >= 0, ya, NEG_SLOPE * ya)


if __name__ == "__main__":
    key = jax.random.PRNGKey(0)
    k_x, k_w, k_g, k_b = jax.random.split(key, 4)

    N, C_in, H, W = 2, 4, 16, 16
    C_out, stride = 8, 2

    x = jax.random.normal(k_x, (N, C_in, H, W), dtype=jnp.float32)
    weight = jax.random.normal(k_w, (C_out, C_in, 4, 4), dtype=jnp.float32) * 0.1
    gamma = 1.0 + 0.1 * jax.random.normal(k_g, (C_out,), dtype=jnp.float32)
    beta = 0.1 * jax.random.normal(k_b, (C_out,), dtype=jnp.float32)

    fwd = jax.jit(dblock_forward, static_argnames=("stride",))
    out = fwd(x, weight, gamma, beta, stride=stride)
    out = jax.block_until_ready(out)

    ref = _reference(x, weight, gamma, beta, stride=stride)
    assert out.shape == (N, C_out, H // stride, W // stride), out.shape
    max_err = float(jnp.max(jnp.abs(out - ref)))
    assert max_err < 2e-3, f"max abs error too large: {max_err}"

    print("KERNEL_OK")
</pallas_src>

<mosaic_0001>
module attributes {stable_mosaic.version = 11 : i64} {
  func.func @_dblock_kernel(%arg0: i32, %arg1: memref<1x16x81xbf16, #tpu.memory_space<vmem>>, %arg2: memref<4x8x16xbf16, #tpu.memory_space<vmem>>, %arg3: memref<8x1xf32, #tpu.memory_space<vmem>>, %arg4: memref<8x1xf32, #tpu.memory_space<vmem>>, %arg5: memref<1x71xf32, #tpu.memory_space<vmem>>, %arg6: memref<1x8x64xf32, #tpu.memory_space<vmem>>) attributes {dimension_semantics = [#tpu.dimension_semantics<parallel>], iteration_bounds = array<i64: 2>, scalar_prefetch = 0 : i64, scratch_operands = 0 : i64, tpu.core_type = #tpu.core_type<tc>, window_params = [{transform_indices = @transform_0, window_bounds = array<i64: 1, 16, 81>}, {pipeline_mode = #tpu.pipeline_mode<synchronous>, transform_indices = @transform_1, window_bounds = array<i64: 4, 8, 16>}, {pipeline_mode = #tpu.pipeline_mode<synchronous>, transform_indices = @transform_2, window_bounds = array<i64: 8, 1>}, {pipeline_mode = #tpu.pipeline_mode<synchronous>, transform_indices = @transform_3, window_bounds = array<i64: 8, 1>}, {pipeline_mode = #tpu.pipeline_mode<synchronous>, transform_indices = @transform_4, window_bounds = array<i64: 1, 71>}, {transform_indices = @transform_5, window_bounds = array<i64: 1, 8, 64>}]} {
    %c0 = arith.constant 0 : index
    %c0_0 = arith.constant 0 : index
    %c0_1 = arith.constant 0 : index
    %0 = vector.load %arg1[%c0, %c0_0, %c0_1] : memref<1x16x81xbf16, #tpu.memory_space<vmem>>, vector<1x16x81xbf16>
    %1 = vector.shape_cast %0 : vector<1x16x81xbf16> to vector<16x81xbf16>
    %c0_2 = arith.constant 0 : index
    %c0_3 = arith.constant 0 : index
    %c0_4 = arith.constant 0 : index
    %2 = vector.load %arg2[%c0_2, %c0_3, %c0_4] : memref<4x8x16xbf16, #tpu.memory_space<vmem>>, vector<1x8x16xbf16>
    %3 = vector.shape_cast %2 : vector<1x8x16xbf16> to vector<8x16xbf16>
    %4 = vector.extract_strided_slice %1 {offsets = [0, 0], sizes = [16, 71], strides = [1, 1]} : vector<16x81xbf16> to vector<16x71xbf16>
    %cst = arith.constant dense<0.000000e+00> : vector<8x71xf32>
    %5 = tpu.matmul %3, %4, %cst {dimension_numbers = #tpu.dot_dimension_numbers<[1], [0], [0], [1], [0, 0, 1, 1], [], []>} : vector<8x16xbf16>, vector<16x71xbf16>, vector<8x71xf32> -> vector<8x71xf32>
    %c1 = arith.constant 1 : index
    %c0_5 = arith.constant 0 : index
    %c0_6 = arith.constant 0 : index
    %6 = vector.load %arg2[%c1, %c0_5, %c0_6] : memref<4x8x16xbf16, #tpu.memory_space<vmem>>, vector<1x8x16xbf16>
    %7 = vector.shape_cast %6 : vector<1x8x16xbf16> to vector<8x16xbf16>
    %8 = vector.extract_strided_slice %1 {offsets = [0, 1], sizes = [16, 71], strides = [1, 1]} : vector<16x81xbf16> to vector<16x71xbf16>
    %cst_7 = arith.constant dense<0.000000e+00> : vector<8x71xf32>
    %9 = tpu.matmul %7, %8, %cst_7 {dimension_numbers = #tpu.dot_dimension_numbers<[1], [0], [0], [1], [0, 0, 1, 1], [], []>} : vector<8x16xbf16>, vector<16x71xbf16>, vector<8x71xf32> -> vector<8x71xf32>
    %10 = arith.addf %5, %9 : vector<8x71xf32>
    %c2 = arith.constant 2 : index
    %c0_8 = arith.constant 0 : index
    %c0_9 = arith.constant 0 : index
    %11 = vector.load %arg2[%c2, %c0_8, %c0_9] : memref<4x8x16xbf16, #tpu.memory_space<vmem>>, vector<1x8x16xbf16>
    %12 = vector.shape_cast %11 : vector<1x8x16xbf16> to vector<8x16xbf16>
    %13 = vector.extract_strided_slice %1 {offsets = [0, 9], sizes = [16, 71], strides = [1, 1]} : vector<16x81xbf16> to vector<16x71xbf16>
    %cst_10 = arith.constant dense<0.000000e+00> : vector<8x71xf32>
    %14 = tpu.matmul %12, %13, %cst_10 {dimension_numbers = #tpu.dot_dimension_numbers<[1], [0], [0], [1], [0, 0, 1, 1], [], []>} : vector<8x16xbf16>, vector<16x71xbf16>, vector<8x71xf32> -> vector<8x71xf32>
    %15 = arith.addf %10, %14 : vector<8x71xf32>
    %c3 = arith.constant 3 : index
    %c0_11 = arith.constant 0 : index
    %c0_12 = arith.constant 0 : index
    %16 = vector.load %arg2[%c3, %c0_11, %c0_12] : memref<4x8x16xbf16, #tpu.memory_space<vmem>>, vector<1x8x16xbf16>
    %17 = vector.shape_cast %16 : vector<1x8x16xbf16> to vector<8x16xbf16>
    %18 = vector.extract_strided_slice %1 {offsets = [0, 10], sizes = [16, 71], strides = [1, 1]} : vector<16x81xbf16> to vector<16x71xbf16>
    %cst_13 = arith.constant dense<0.000000e+00> : vector<8x71xf32>
    %19 = tpu.matmul %17, %18, %cst_13 {dimension_numbers = #tpu.dot_dimension_numbers<[1], [0], [0], [1], [0, 0, 1, 1], [], []>} : vector<8x16xbf16>, vector<16x71xbf16>, vector<8x71xf32> -> vector<8x71xf32>
    %20 = arith.addf %15, %19 : vector<8x71xf32>
    %c0_14 = arith.constant 0 : index
    %c0_15 = arith.constant 0 : index
    %21 = vector.load %arg5[%c0_14, %c0_15] : memref<1x71xf32, #tpu.memory_space<vmem>>, vector<1x71xf32>
    %22 = vector.broadcast %21 : vector<1x71xf32> to vector<8x71xf32>
    %23 = arith.mulf %20, %22 : vector<8x71xf32>
    %cst_16 = arith.constant dense<0.000000e+00> : vector<8xf32>
    %24 = vector.multi_reduction <add>, %23, %cst_16 [1] : vector<8x71xf32> to vector<8xf32>
    %25 = vector.shape_cast %24 : vector<8xf32> to vector<8x1xf32>
    %cst_17 = arith.constant 1.562500e-02 : f32
    %26 = vector.broadcast %cst_17 : f32 to vector<8x1xf32>
    %27 = arith.mulf %25, %26 : vector<8x1xf32>
    %28 = arith.mulf %23, %23 : vector<8x71xf32>
    %cst_18 = arith.constant dense<0.000000e+00> : vector<8xf32>
    %29 = vector.multi_reduction <add>, %28, %cst_18 [1] : vector<8x71xf32> to vector<8xf32>
    %30 = vector.shape_cast %29 : vector<8xf32> to vector<8x1xf32>
    %cst_19 = arith.constant 1.562500e-02 : f32
    %31 = vector.broadcast %cst_19 : f32 to vector<8x1xf32>
    %32 = arith.mulf %30, %31 : vector<8x1xf32>
    %33 = arith.mulf %27, %27 : vector<8x1xf32>
    %34 = arith.subf %32, %33 : vector<8x1xf32>
    %cst_20 = arith.constant 0.000000e+00 : f32
    %35 = vector.broadcast %cst_20 : f32 to vector<8x1xf32>
    %36 = arith.maximumf %34, %35 : vector<8x1xf32>
    %cst_21 = arith.constant 9.99999974E-6 : f32
    %37 = vector.broadcast %cst_21 : f32 to vector<8x1xf32>
    %38 = arith.addf %36, %37 : vector<8x1xf32>
    %39 = math.rsqrt %38 : vector<8x1xf32>
    %c0_22 = arith.constant 0 : index
    %c0_23 = arith.constant 0 : index
    %40 = vector.load %arg3[%c0_22, %c0_23] : memref<8x1xf32, #tpu.memory_space<vmem>>, vector<8x1xf32>
    %41 = arith.mulf %40, %39 : vector<8x1xf32>
    %c0_24 = arith.constant 0 : index
    %c0_25 = arith.constant 0 : index
    %42 = vector.load %arg4[%c0_24, %c0_25] : memref<8x1xf32, #tpu.memory_space<vmem>>, vector<8x1xf32>
    %43 = arith.mulf %27, %41 : vector<8x1xf32>
    %44 = arith.subf %42, %43 : vector<8x1xf32>
    %45 = vector.broadcast %41 : vector<8x1xf32> to vector<8x71xf32>
    %46 = arith.mulf %23, %45 : vector<8x71xf32>
    %47 = vector.broadcast %44 : vector<8x1xf32> to vector<8x71xf32>
    %48 = arith.addf %46, %47 : vector<8x71xf32>
    %cst_26 = arith.constant 2.000000e-01 : f32
    %49 = vector.broadcast %cst_26 : f32 to vector<8x71xf32>
    %50 = arith.mulf %49, %48 : vector<8x71xf32>
    %51 = arith.maximumf %48, %50 : vector<8x71xf32>
    %52 = vector.extract_strided_slice %51 {offsets = [0, 0], sizes = [8, 8], strides = [1, 1]} : vector<8x71xf32> to vector<8x8xf32>
    %c0_27 = arith.constant 0 : index
    %c0_28 = arith.constant 0 : index
    %c0_29 = arith.constant 0 : index
    %53 = vector.load %arg6[%c0_27, %c0_28, %c0_29] : memref<1x8x64xf32, #tpu.memory_space<vmem>>, vector<1x8x8xf32>
    %54 = vector.shape_cast %53 : vector<1x8x8xf32> to vector<8x8xf32>
    %55 = vector.shape_cast %52 : vector<8x8xf32> to vector<1x8x8xf32>
    tpu.vector_store %arg6[%c0_27, %c0_28, %c0_29], %55 {strides = array<i32>} : memref<1x8x64xf32, #tpu.memory_space<vmem>>, vector<1x8x8xf32>,
    %56 = vector.extract_strided_slice %51 {offsets = [0, 9], sizes = [8, 8], strides = [1, 1]} : vector<8x71xf32> to vector<8x8xf32>
    %c0_30 = arith.constant 0 : index
    %c0_31 = arith.constant 0 : index
    %c8 = arith.constant 8 : index
    %57 = vector.load %arg6[%c0_30, %c0_31, %c8] : memref<1x8x64xf32, #tpu.memory_space<vmem>>, vector<1x8x8xf32>
    %58 = vector.shape_cast %57 : vector<1x8x8xf32> to vector<8x8xf32>
    %59 = vector.shape_cast %56 : vector<8x8xf32> to vector<1x8x8xf32>
    tpu.vector_store %arg6[%c0_30, %c0_31, %c8], %59 {strides = array<i32>} : memref<1x8x64xf32, #tpu.memory_space<vmem>>, vector<1x8x8xf32>,
    %60 = vector.extract_strided_slice %51 {offsets = [0, 18], sizes = [8, 8], strides = [1, 1]} : vector<8x71xf32> to vector<8x8xf32>
    %c0_32 = arith.constant 0 : index
    %c0_33 = arith.constant 0 : index
    %c16 = arith.constant 16 : index
    %61 = vector.load %arg6[%c0_32, %c0_33, %c16] : memref<1x8x64xf32, #tpu.memory_space<vmem>>, vector<1x8x8xf32>
    %62 = vector.shape_cast %61 : vector<1x8x8xf32> to vector<8x8xf32>
    %63 = vector.shape_cast %60 : vector<8x8xf32> to vector<1x8x8xf32>
    tpu.vector_store %arg6[%c0_32, %c0_33, %c16], %63 {strides = array<i32>} : memref<1x8x64xf32, #tpu.memory_space<vmem>>, vector<1x8x8xf32>,
    %64 = vector.extract_strided_slice %51 {offsets = [0, 27], sizes = [8, 8], strides = [1, 1]} : vector<8x71xf32> to vector<8x8xf32>
    %c0_34 = arith.constant 0 : index
    %c0_35 = arith.constant 0 : index
    %c24 = arith.constant 24 : index
    %65 = vector.load %arg6[%c0_34, %c0_35, %c24] : memref<1x8x64xf32, #tpu.memory_space<vmem>>, vector<1x8x8xf32>
    %66 = vector.shape_cast %65 : vector<1x8x8xf32> to vector<8x8xf32>
    %67 = vector.shape_cast %64 : vector<8x8xf32> to vector<1x8x8xf32>
    tpu.vector_store %arg6[%c0_34, %c0_35, %c24], %67 {strides = array<i32>} : memref<1x8x64xf32, #tpu.memory_space<vmem>>, vector<1x8x8xf32>,
    %68 = vector.extract_strided_slice %51 {offsets = [0, 36], sizes = [8, 8], strides = [1, 1]} : vector<8x71xf32> to vector<8x8xf32>
    %c0_36 = arith.constant 0 : index
    %c0_37 = arith.constant 0 : index
    %c32 = arith.constant 32 : index
    %69 = vector.load %arg6[%c0_36, %c0_37, %c32] : memref<1x8x64xf32, #tpu.memory_space<vmem>>, vector<1x8x8xf32>
    %70 = vector.shape_cast %69 : vector<1x8x8xf32> to vector<8x8xf32>
    %71 = vector.shape_cast %68 : vector<8x8xf32> to vector<1x8x8xf32>
    tpu.vector_store %arg6[%c0_36, %c0_37, %c32], %71 {strides = array<i32>} : memref<1x8x64xf32, #tpu.memory_space<vmem>>, vector<1x8x8xf32>,
    %72 = vector.extract_strided_slice %51 {offsets = [0, 45], sizes = [8, 8], strides = [1, 1]} : vector<8x71xf32> to vector<8x8xf32>
    %c0_38 = arith.constant 0 : index
    %c0_39 = arith.constant 0 : index
    %c40 = arith.constant 40 : index
    %73 = vector.load %arg6[%c0_38, %c0_39, %c40] : memref<1x8x64xf32, #tpu.memory_space<vmem>>, vector<1x8x8xf32>
    %74 = vector.shape_cast %73 : vector<1x8x8xf32> to vector<8x8xf32>
    %75 = vector.shape_cast %72 : vector<8x8xf32> to vector<1x8x8xf32>
    tpu.vector_store %arg6[%c0_38, %c0_39, %c40], %75 {strides = array<i32>} : memref<1x8x64xf32, #tpu.memory_space<vmem>>, vector<1x8x8xf32>,
    %76 = vector.extract_strided_slice %51 {offsets = [0, 54], sizes = [8, 8], strides = [1, 1]} : vector<8x71xf32> to vector<8x8xf32>
    %c0_40 = arith.constant 0 : index
    %c0_41 = arith.constant 0 : index
    %c48 = arith.constant 48 : index
    %77 = vector.load %arg6[%c0_40, %c0_41, %c48] : memref<1x8x64xf32, #tpu.memory_space<vmem>>, vector<1x8x8xf32>
    %78 = vector.shape_cast %77 : vector<1x8x8xf32> to vector<8x8xf32>
    %79 = vector.shape_cast %76 : vector<8x8xf32> to vector<1x8x8xf32>
    tpu.vector_store %arg6[%c0_40, %c0_41, %c48], %79 {strides = array<i32>} : memref<1x8x64xf32, #tpu.memory_space<vmem>>, vector<1x8x8xf32>,
    %80 = vector.extract_strided_slice %51 {offsets = [0, 63], sizes = [8, 8], strides = [1, 1]} : vector<8x71xf32> to vector<8x8xf32>
    %c0_42 = arith.constant 0 : index
    %c0_43 = arith.constant 0 : index
    %c56 = arith.constant 56 : index
    %81 = vector.load %arg6[%c0_42, %c0_43, %c56] : memref<1x8x64xf32, #tpu.memory_space<vmem>>, vector<1x8x8xf32>
    %82 = vector.shape_cast %81 : vector<1x8x8xf32> to vector<8x8xf32>
    %83 = vector.shape_cast %80 : vector<8x8xf32> to vector<1x8x8xf32>
    tpu.vector_store %arg6[%c0_42, %c0_43, %c56], %83 {strides = array<i32>} : memref<1x8x64xf32, #tpu.memory_space<vmem>>, vector<1x8x8xf32>,
    return
  }
  func.func @transform_0(%arg0: i32) -> (i32, i32, i32) {
    %c0_i32 = arith.constant 0 : i32
    %c0_i32_0 = arith.constant 0 : i32
    %c0_i32_1 = arith.constant 0 : i32
    return %arg0, %c0_i32, %c0_i32_0 : i32, i32, i32
  }
  func.func @transform_1(%arg0: i32) -> (i32, i32, i32) {
    %c0_i32 = arith.constant 0 : i32
    %c0_i32_0 = arith.constant 0 : i32
    %c0_i32_1 = arith.constant 0 : i32
    %c0_i32_2 = arith.constant 0 : i32
    return %c0_i32, %c0_i32_0, %c0_i32_1 : i32, i32, i32
  }
  func.func @transform_2(%arg0: i32) -> (i32, i32) {
    %c0_i32 = arith.constant 0 : i32
    %c0_i32_0 = arith.constant 0 : i32
    %c0_i32_1 = arith.constant 0 : i32
    return %c0_i32, %c0_i32_0 : i32, i32
  }
  func.func @transform_3(%arg0: i32) -> (i32, i32) {
    %c0_i32 = arith.constant 0 : i32
    %c0_i32_0 = arith.constant 0 : i32
    %c0_i32_1 = arith.constant 0 : i32
    return %c0_i32, %c0_i32_0 : i32, i32
  }
  func.func @transform_4(%arg0: i32) -> (i32, i32) {
    %c0_i32 = arith.constant 0 : i32
    %c0_i32_0 = arith.constant 0 : i32
    %c0_i32_1 = arith.constant 0 : i32
    return %c0_i32, %c0_i32_0 : i32, i32
  }
  func.func @transform_5(%arg0: i32) -> (i32, i32, i32) {
    %c0_i32 = arith.constant 0 : i32
    %c0_i32_0 = arith.constant 0 : i32
    %c0_i32_1 = arith.constant 0 : i32
    return %arg0, %c0_i32, %c0_i32_0 : i32, i32, i32
  }
}

</mosaic_0001>

<llo_original>
// kernel: dblock_forward.1
$region0: #{dblock_forward.1}
  #allocation0 [shape = 'u32[]', space=smem, size = 0x4, offset = 0x4, fixed_abs, tag = 'smem constant byte address 0x4 - core index']
  #allocation1 [shape = 'u32[144,128]{1,0:T(1,128)}', space=vmem, size = 0x12000, scoped, tag = 'internal scratch']
  %s0 = inlined_call_operand.vmem [shape: bf16[2,16,81], index: 0, kind: input, shape index: {}]
  %s1 = inlined_call_operand.vmem [shape: bf16[4,8,16], index: 1, kind: input, shape index: {}]
  %s2 = inlined_call_operand.vmem [shape: f32[8,1], index: 2, kind: input, shape index: {}]
  %s3 = inlined_call_operand.vmem [shape: f32[8,1], index: 3, kind: input, shape index: {}]
  %s4 = inlined_call_operand.vmem [shape: f32[1,71], index: 4, kind: input, shape index: {}]
  %s5 = inlined_call_operand.vmem [shape: f32[2,8,64], index: 5, kind: output, shape index: {}]
  %s6 = sld [smem:[#allocation0]]
  $region53: #{dblock_forward.1} parent=0
    _
  %s8 = ssub.s32 1, %s6
  %s9 = scalar_select 0, %s8, %s6
  loop: start=0, step=1, limit=4
  $region2: #{dblock_forward.1} parent=0 // loop_pre_header
    _
  $region3: #{dblock_forward.1} parent=0 // loop_header
    %s11 = sphi 0, %s15
    %p12 = scmp.ge.s32.totalorder %s11, 4
    %s21 = sphi 0, %s23
    %s24 = sphi 0, %s21
    %s25 = sphi 0, %s24
    %s41 = sphi 0, %s25
    %s45 = sphi 0, %s45
    %s47 = sphi 0, %s45
    %s48 = sphi 0, %s47
    %s62 = sphi 0, %s48
    %s66 = sphi 0, %s66
    %s68 = sphi 0, %s66
    %s69 = sphi 0, %s68
    %s83 = sphi 0, %s69
    %s87 = sphi 0, %s87
    %s89 = sphi 0, %s87
    %s90 = sphi 0, %s89
    %s104 = sphi 0, %s90
    %s108 = sphi 0, %s108
    %s110 = sphi 0, %s108
    %s111 = sphi 0, %s110
    %s125 = sphi 0, %s111
    %s131 = sphi 0, %s133
    %s134 = sphi 0, %s131
    %s135 = sphi 0, %s134
    %s151 = sphi 0, %s135
  $region4: #{dblock_forward.1} parent=0 // loop_header_branch
    %14 = sbr.rel (%p12) target = $region8
  $region5: #{dblock_forward.1} parent=0 // loop_body
    %s16 = ssub.s32 %s11, 1
    %s17 = ssub.s32 %s11, 2
    %s18 = sadd.s32 %s11, 1
    %s19 = ssub.s32 %s11, %s18
    %p20 = scmp.eq.s32.totalorder %s19, 0
    %s22 = sadd.s32 %s21, 1
    %s23 = scalar_select %p20, %s21, %s22
    %p26 = pneg %p20
    %p27 = scmp.eq.s32.totalorder %s11, 1
    %p28 = por %p26, %p27
    %p29 = scmp.ne.s32.totalorder %s21, %s24
    %p30 = scmp.eq.s32.totalorder %s11, 0
    %p31 = por %p29, %p30
    %p32 = scmp.ne.s32.totalorder %s21, %s24
    %p33 = scmp.eq.s32.totalorder %s16, 1
    %p34 = por %p32, %p33
    %p35 = scmp.ne.s32.totalorder %s24, %s25
    %p36 = scmp.eq.s32.totalorder %s16, 0
    %p37 = por %p35, %p36
    %p38 = scmp.ne.s32.totalorder %s24, %s25
    %p39 = scmp.eq.s32.totalorder %s17, 1
    %p40 = por %p38, %p39
    %p42 = scmp.ne.s32.totalorder %s25, %s41
    %p43 = scmp.eq.s32.totalorder %s17, 0
    %p44 = por %p42, %p43
    %s46 = sadd.s32 %s45, 1
    %p49 = scmp.eq.s32.totalorder %s11, 1
    %p50 = scmp.ne.s32.totalorder %s45, %s47
    %p51 = scmp.eq.s32.totalorder %s11, 0
    %p52 = por %p50, %p51
    %p53 = scmp.ne.s32.totalorder %s45, %s47
    %p54 = scmp.eq.s32.totalorder %s16, 1
    %p55 = por %p53, %p54
    %p56 = scmp.ne.s32.totalorder %s47, %s48
    %p57 = scmp.eq.s32.totalorder %s16, 0
    %p58 = por %p56, %p57
    %p59 = scmp.ne.s32.totalorder %s47, %s48
    %p60 = scmp.eq.s32.totalorder %s17, 1
    %p61 = por %p59, %p60
    %p63 = scmp.ne.s32.totalorder %s48, %s62
    %p64 = scmp.eq.s32.totalorder %s17, 0
    %p65 = por %p63, %p64
    %s67 = sadd.s32 %s66, 1
    %p70 = scmp.eq.s32.totalorder %s11, 1
    %p71 = scmp.ne.s32.totalorder %s66, %s68
    %p72 = scmp.eq.s32.totalorder %s11, 0
    %p73 = por %p71, %p72
    %p74 = scmp.ne.s32.totalorder %s66, %s68
    %p75 = scmp.eq.s32.totalorder %s16, 1
    %p76 = por %p74, %p75
    %p77 = scmp.ne.s32.totalorder %s68, %s69
    %p78 = scmp.eq.s32.totalorder %s16, 0
    %p79 = por %p77, %p78
    %p80 = scmp.ne.s32.totalorder %s68, %s69
    %p81 = scmp.eq.s32.totalorder %s17, 1
    %p82 = por %p80, %p81
    %p84 = scmp.ne.s32.totalorder %s69, %s83
    %p85 = scmp.eq.s32.totalorder %s17, 0
    %p86 = por %p84, %p85
    %s88 = sadd.s32 %s87, 1
    %p91 = scmp.eq.s32.totalorder %s11, 1
    %p92 = scmp.ne.s32.totalorder %s87, %s89
    %p93 = scmp.eq.s32.totalorder %s11, 0
    %p94 = por %p92, %p93
    %p95 = scmp.ne.s32.totalorder %s87, %s89
    %p96 = scmp.eq.s32.totalorder %s16, 1
    %p97 = por %p95, %p96
    %p98 = scmp.ne.s32.totalorder %s89, %s90
    %p99 = scmp.eq.s32.totalorder %s16, 0
    %p100 = por %p98, %p99
    %p101 = scmp.ne.s32.totalorder %s89, %s90
    %p102 = scmp.eq.s32.totalorder %s17, 1
    %p103 = por %p101, %p102
    %p105 = scmp.ne.s32.totalorder %s90, %s104
    %p106 = scmp.eq.s32.totalorder %s17, 0
    %p107 = por %p105, %p106
    %s109 = sadd.s32 %s108, 1
    %p112 = scmp.eq.s32.totalorder %s11, 1
    %p113 = scmp.ne.s32.totalorder %s108, %s110
    %p114 = scmp.eq.s32.totalorder %s11, 0
    %p115 = por %p113, %p114
    %p116 = scmp.ne.s32.totalorder %s108, %s110
    %p117 = scmp.eq.s32.totalorder %s16, 1
    %p118 = por %p116, %p117
    %p119 = scmp.ne.s32.totalorder %s110, %s111
    %p120 = scmp.eq.s32.totalorder %s16, 0
    %p121 = por %p119, %p120
    %p122 = scmp.ne.s32.totalorder %s110, %s111
    %p123 = scmp.eq.s32.totalorder %s17, 1
    %p124 = por %p122, %p123
    %p126 = scmp.ne.s32.totalorder %s111, %s125
    %p127 = scmp.eq.s32.totalorder %s17, 0
    %p128 = por %p126, %p127
    %s129 = ssub.s32 %s11, %s18
    %p130 = scmp.eq.s32.totalorder %s129, 0
    %s132 = sadd.s32 %s131, 1
    %s133 = scalar_select %p130, %s131, %s132
    %p136 = pneg %p130
    %p137 = scmp.eq.s32.totalorder %s11, 1
    %p138 = por %p136, %p137
    %p139 = scmp.ne.s32.totalorder %s131, %s134
    %p140 = scmp.eq.s32.totalorder %s11, 0
    %p141 = por %p139, %p140
    %p142 = scmp.ne.s32.totalorder %s131, %s134
    %p143 = scmp.eq.s32.totalorder %s16, 1
    %p144 = por %p142, %p143
    %p145 = scmp.ne.s32.totalorder %s134, %s135
    %p146 = scmp.eq.s32.totalorder %s16, 0
    %p147 = por %p145, %p146
    %p148 = scmp.ne.s32.totalorder %s134, %s135
    %p149 = scmp.eq.s32.totalorder %s17, 1
    %p150 = por %p148, %p149
    %p152 = scmp.ne.s32.totalorder %s135, %s151
    %p153 = scmp.eq.s32.totalorder %s17, 0
    %p154 = por %p152, %p153
    %p155 = scmp.le.s32.totalorder 1, %s11
    %p156 = scmp.lt.s32.totalorder %s11, 3
    %p157 = pnand %p155, %p156
    %p158 = pneg %p157
    // Predicated region
    $region9: #{dblock_forward.1} parent=5 // pred_check
      _
    $region10: #{dblock_forward.1} parent=5 // pred_check_branch
      %160 = sbr.rel (%p157) target = $region12
    $region11: #{dblock_forward.1} parent=5 // pred_region
      %s161 = ssub.s32 %s11, 1
      // Predicated region
      $region13: #{dblock_forward.1} parent=11 // pred_check
        %p162 = pneg %p58
      $region14: #{dblock_forward.1} parent=11 // pred_check_branch
        %164 = sbr.rel (%p162) target = $region16
      $region15: #{dblock_forward.1} parent=11 // pred_region
        _
      $region16: #{dblock_forward.1} parent=11 // pred_fallthru
        _
      // Predicated region
      $region17: #{dblock_forward.1} parent=11 // pred_check
        %p165 = pneg %p79
      $region18: #{dblock_forward.1} parent=11 // pred_check_branch
        %167 = sbr.rel (%p165) target = $region20
      $region19: #{dblock_forward.1} parent=11 // pred_region
        _
      $region20: #{dblock_forward.1} parent=11 // pred_fallthru
        _
      // Predicated region
      $region21: #{dblock_forward.1} parent=11 // pred_check
        %p168 = pneg %p100
      $region22: #{dblock_forward.1} parent=11 // pred_check_branch
        %170 = sbr.rel (%p168) target = $region24
      $region23: #{dblock_forward.1} parent=11 // pred_region
        _
      $region24: #{dblock_forward.1} parent=11 // pred_fallthru
        _
      // Predicated region
      $region25: #{dblock_forward.1} parent=11 // pred_check
        %p171 = pneg %p121
      $region26: #{dblock_forward.1} parent=11 // pred_check_branch
        %173 = sbr.rel (%p171) target = $region28
      $region27: #{dblock_forward.1} parent=11 // pred_region
        _
      $region28: #{dblock_forward.1} parent=11 // pred_fallthru
        _
    $region12: #{dblock_forward.1} parent=5 // pred_fallthru
      _
    %p174 = scmp.lt.s32.totalorder %s11, 2
    // Predicated region
    $region29: #{dblock_forward.1} parent=5 // pred_check
      %p175 = pneg %p174
    $region30: #{dblock_forward.1} parent=5 // pred_check_branch
      %177 = sbr.rel (%p175) target = $region32
    $region31: #{dblock_forward.1} parent=5 // pred_region
      // Predicated region
      $region33: #{dblock_forward.1} parent=31 // pred_check
        %p178 = pneg %p31
      $region34: #{dblock_forward.1} parent=31 // pred_check_branch
        %180 = sbr.rel (%p178) target = $region36
      $region35: #{dblock_forward.1} parent=31 // pred_region
        %p181 = scmp.lt.s32.totalorder %s11, 1
        %s182 = scalar_select %p181, %s11, 1
        %s183 = smul.addr %s182, 2
        %s184 = smul.addr %s183, 4
        %s185 = scalar_lea.vmem %s0, %s184
      $region36: #{dblock_forward.1} parent=31 // pred_fallthru
        _
    $region32: #{dblock_forward.1} parent=5 // pred_fallthru
      _
    %p186 = scmp.le.s32.totalorder 1, %s11
    %p187 = scmp.lt.s32.totalorder %s11, 3
    %p188 = pnand %p186, %p187
    %p189 = pneg %p188
    // Predicated region
    $region37: #{dblock_forward.1} parent=5 // pred_check
      _
    $region38: #{dblock_forward.1} parent=5 // pred_check_branch
      %191 = sbr.rel (%p188) target = $region40
    $region39: #{dblock_forward.1} parent=5 // pred_region
      %s192 = ssub.s32 %s11, 1
      %p193 = scmp.lt.s32.totalorder %s16, 1
      %s194 = scalar_select %p193, %s16, 1
      %s195 = smul.addr %s194, 2
      %s196 = smul.addr %s195, 4
      %s197 = scalar_lea.vmem %s0, %s196
      %p198 = pneg %p37
      %p199 = pneg %p34
      %p200 = pneg %p58
      %p201 = pneg %p55
      %p202 = pneg %p79
      %p203 = pneg %p76
      %p204 = pneg %p100
      %p205 = pneg %p97
      %p206 = pneg %p121
      %p207 = pneg %p118
      %p208 = pneg %p147
      %p209 = pneg %p144
      %p210 = scmp.lt.s32.totalorder %s16, 1
      %s211 = scalar_select %p210, %s16, 1
      %s212 = smul.addr %s211, 8
      %s213 = scalar_lea.vmem %s5, %s212
      %p214 = scmp.lt.s32.totalorder %s16, 1
      %s215 = scalar_select %p214, %s16, 1
      %s216 = smul.addr %s215, 2
      %s217 = smul.addr %s216, 4
      %s218 = scalar_lea.vmem %s0, %s217
      %p219 = scmp.lt.s32.totalorder %s16, 1
      %s220 = scalar_select %p219, %s16, 1
      %s221 = smul.addr %s220, 8
      %s222 = scalar_lea.vmem %s5, %s221
      %v224 = vld [vmem:[%s218] sm:$0xf]
      %v225 = vld [vmem:[%s218 + $0x4] sm:$0xf]
      %v226 = vld [vmem:[%s1] sm:$0xf]
      %s227 = scalar_lea.vmem %s1, 4
      %v228 = vld [vmem:[%s227] sm:$0xf]
      %v231 = vunpack.c.l.b16 %v224
      %v232 = vunpack.c.l.b16 %v225
      %v233 = vpack.c.b16 %v232, %v231
      %234 = vrot.lane.b32.xlu0 %v233, 127
      %v235 = vpop.permute.xlu0 %234
      %vm237 = vcmask 130048
      %v239 = vsel %vm237, %v228, 0
      %241 = vmatprep.subr.bf16.mxu0 0
      %242 = vmatpush1.bf16.msra.mxu0 0
      %243 = vmatprep.subr.bf16.mxu0 0
      %244 = vmatpush1.bf16.msra.mxu0 0
      %245 = vmatprep.subr.bf16.mxu0 0
      %246 = vmatpush1.bf16.msra.mxu0 0
      %247 = vmatprep.subr.bf16.mxu0 0
      %248 = vmatpush1.bf16.msra.mxu0 0
      %249 = vmatprep.subr.bf16.mxu0 0
      %250 = vmatpush1.bf16.msra.mxu0 0
      %251 = vmatprep.subr.bf16.mxu0 0
      %252 = vmatpush1.bf16.msra.mxu0 0
      %253 = vmatprep.subr.bf16.mxu0 0
      %254 = vmatpush1.bf16.msra.mxu0 0
      %255 = vmatprep.subr.bf16.mxu0 0
      %256 = vmatpush1.bf16.msra.mxu0 %v235
      %257 = vmatprep.subr.bf16.mxu0 0
      %258 = vmatpush2.bf16.msra.mxu0 0
      %259 = vmatprep.subr.bf16.mxu0 0
      %260 = vmatpush2.bf16.msra.mxu0 0
      %261 = vmatprep.subr.bf16.mxu0 0
      %262 = vmatpush2.bf16.msra.mxu0 0
      %263 = vmatprep.subr.bf16.mxu0 0
      %264 = vmatpush2.bf16.msra.mxu0 0
      %265 = vmatprep.subr.bf16.mxu0 0
      %266 = vmatpush2.bf16.msra.mxu0 0
      %267 = vmatprep.subr.bf16.mxu0 0
      %268 = vmatpush2.bf16.msra.mxu0 0
      %269 = vmatprep.subr.bf16.mxu0 0
      %270 = vmatpush2.bf16.msra.mxu0 0
      %271 = vmatprep.subr.bf16.mxu0 0
      %272 = vmatpush2.bf16.msra.mxu0 0
      %273 = vmatprep.mubr.bf16.mxu0 0
      %274 = vmatmul.mubr.bf16.gmra.mxu0 %v239
      %v275 = vpop.f32.mrf.mxu0
      %v276 = vadd.f32 0.0, %v275
      %v277 = vpop.f32.mrf.mxu0
      %v278 = vpop.f32.mrf.mxu0
      %v279 = vpop.f32.mrf.mxu0
      %280 = vdwg.mxu0
      %v283 = vsel %vm237, %v226, 0
      %285 = vmatprep.subr.bf16.mxu0 0
      %286 = vmatpush1.bf16.msra.mxu0 0
      %287 = vmatprep.subr.bf16.mxu0 0
      %288 = vmatpush1.bf16.msra.mxu0 0
      %289 = vmatprep.subr.bf16.mxu0 0
      %290 = vmatpush1.bf16.msra.mxu0 0
      %291 = vmatprep.subr.bf16.mxu0 0
      %292 = vmatpush1.bf16.msra.mxu0 0
      %293 = vmatprep.subr.bf16.mxu0 0
      %294 = vmatpush1.bf16.msra.mxu0 0
      %295 = vmatprep.subr.bf16.mxu0 0
      %296 = vmatpush1.bf16.msra.mxu0 0
      %297 = vmatprep.subr.bf16.mxu0 0
      %298 = vmatpush1.bf16.msra.mxu0 0
      %299 = vmatprep.subr.bf16.mxu0 0
      %300 = vmatpush1.bf16.msra.mxu0 %v233
      %301 = vmatprep.subr.bf16.mxu0 0
      %302 = vmatpush2.bf16.msra.mxu0 0
      %303 = vmatprep.subr.bf16.mxu0 0
      %304 = vmatpush2.bf16.msra.mxu0 0
      %305 = vmatprep.subr.bf16.mxu0 0
      %306 = vmatpush2.bf16.msra.mxu0 0
      %307 = vmatprep.subr.bf16.mxu0 0
      %308 = vmatpush2.bf16.msra.mxu0 0
      %309 = vmatprep.subr.bf16.mxu0 0
      %310 = vmatpush2.bf16.msra.mxu0 0
      %311 = vmatprep.subr.bf16.mxu0 0
      %312 = vmatpush2.bf16.msra.mxu0 0
      %313 = vmatprep.subr.bf16.mxu0 0
      %314 = vmatpush2.bf16.msra.mxu0 0
      %315 = vmatprep.subr.bf16.mxu0 0
      %316 = vmatpush2.bf16.msra.mxu0 0
      %317 = vmatprep.mubr.bf16.mxu0 0
      %318 = vmatmul.mubr.bf16.gmra.mxu0 %v283
      %v319 = vpop.f32.mrf.mxu0
      %v320 = vadd.f32 %v276, %v319
      %v321 = vpop.f32.mrf.mxu0
      %v322 = vpop.f32.mrf.mxu0
      %v323 = vpop.f32.mrf.mxu0
      %324 = vdwg.mxu0
      %s325 = scalar_lea.vmem %s1, 8
      %v326 = vld [vmem:[%s325] sm:$0xf]
      %327 = vrot.lane.b32.xlu0 %v233, 119
      %v328 = vpop.permute.xlu0 %327
      %v331 = vsel %vm237, %v326, 0
      %333 = vmatprep.subr.bf16.mxu0 0
      %334 = vmatpush1.bf16.msra.mxu0 0
      %335 = vmatprep.subr.bf16.mxu0 0
      %336 = vmatpush1.bf16.msra.mxu0 0
      %337 = vmatprep.subr.bf16.mxu0 0
      %338 = vmatpush1.bf16.msra.mxu0 0
      %339 = vmatprep.subr.bf16.mxu0 0
      %340 = vmatpush1.bf16.msra.mxu0 0
      %341 = vmatprep.subr.bf16.mxu0 0
      %342 = vmatpush1.bf16.msra.mxu0 0
      %343 = vmatprep.subr.bf16.mxu0 0
      %344 = vmatpush1.bf16.msra.mxu0 0
      %345 = vmatprep.subr.bf16.mxu0 0
      %346 = vmatpush1.bf16.msra.mxu0 0
      %347 = vmatprep.subr.bf16.mxu0 0
      %348 = vmatpush1.bf16.msra.mxu0 %v328
      %349 = vmatprep.subr.bf16.mxu0 0
      %350 = vmatpush2.bf16.msra.mxu0 0
      %351 = vmatprep.subr.bf16.mxu0 0
      %352 = vmatpush2.bf16.msra.mxu0 0
      %353 = vmatprep.subr.bf16.mxu0 0
      %354 = vmatpush2.bf16.msra.mxu0 0
      %355 = vmatprep.subr.bf16.mxu0 0
      %356 = vmatpush2.bf16.msra.mxu0 0
      %357 = vmatprep.subr.bf16.mxu0 0
      %358 = vmatpush2.bf16.msra.mxu0 0
      %359 = vmatprep.subr.bf16.mxu0 0
      %360 = vmatpush2.bf16.msra.mxu0 0
      %361 = vmatprep.subr.bf16.mxu0 0
      %362 = vmatpush2.bf16.msra.mxu0 0
      %363 = vmatprep.subr.bf16.mxu0 0
      %364 = vmatpush2.bf16.msra.mxu0 0
      %365 = vmatprep.mubr.bf16.mxu0 0
      %366 = vmatmul.mubr.bf16.gmra.mxu0 %v331
      %v367 = vpop.f32.mrf.mxu0
      %v368 = vadd.f32 0.0, %v367
      %v369 = vpop.f32.mrf.mxu0
      %v370 = vpop.f32.mrf.mxu0
      %v371 = vpop.f32.mrf.mxu0
      %372 = vdwg.mxu0
      %v373 = vadd.f32 %v320, %v368
      %s374 = scalar_lea.vmem %s1, 12
      %v375 = vld [vmem:[%s374] sm:$0xf]
      %376 = vrot.lane.b32.xlu0 %v233, 118
      %v377 = vpop.permute.xlu0 %376
      %v380 = vsel %vm237, %v375, 0
      %382 = vmatprep.subr.bf16.mxu0 0
      %383 = vmatpush1.bf16.msra.mxu0 0
      %384 = vmatprep.subr.bf16.mxu0 0
      %385 = vmatpush1.bf16.msra.mxu0 0
      %386 = vmatprep.subr.bf16.mxu0 0
      %387 = vmatpush1.bf16.msra.mxu0 0
      %388 = vmatprep.subr.bf16.mxu0 0
      %389 = vmatpush1.bf16.msra.mxu0 0
      %390 = vmatprep.subr.bf16.mxu0 0
      %391 = vmatpush1.bf16.msra.mxu0 0
      %392 = vmatprep.subr.bf16.mxu0 0
      %393 = vmatpush1.bf16.msra.mxu0 0
      %394 = vmatprep.subr.bf16.mxu0 0
      %395 = vmatpush1.bf16.msra.mxu0 0
      %396 = vmatprep.subr.bf16.mxu0 0
      %397 = vmatpush1.bf16.msra.mxu0 %v377
      %398 = vmatprep.subr.bf16.mxu0 0
      %399 = vmatpush2.bf16.msra.mxu0 0
      %400 = vmatprep.subr.bf16.mxu0 0
      %401 = vmatpush2.bf16.msra.mxu0 0
      %402 = vmatprep.subr.bf16.mxu0 0
      %403 = vmatpush2.bf16.msra.mxu0 0
      %404 = vmatprep.subr.bf16.mxu0 0
      %405 = vmatpush2.bf16.msra.mxu0 0
      %406 = vmatprep.subr.bf16.mxu0 0
      %407 = vmatpush2.bf16.msra.mxu0 0
      %408 = vmatprep.subr.bf16.mxu0 0
      %409 = vmatpush2.bf16.msra.mxu0 0
      %410 = vmatprep.subr.bf16.mxu0 0
      %411 = vmatpush2.bf16.msra.mxu0 0
      %412 = vmatprep.subr.bf16.mxu0 0
      %413 = vmatpush2.bf16.msra.mxu0 0
      %414 = vmatprep.mubr.bf16.mxu0 0
      %415 = vmatmul.mubr.bf16.gmra.mxu0 %v380
      %v416 = vpop.f32.mrf.mxu0
      %v417 = vadd.f32 0.0, %v416
      %v418 = vpop.f32.mrf.mxu0
      %v419 = vpop.f32.mrf.mxu0
      %v420 = vpop.f32.mrf.mxu0
      %421 = vdwg.mxu0
      %v422 = vadd.f32 %v373, %v417
      %v423 = vld [vmem:[%s4] sm:$0x1]
      %v425 = vlaneseq
      %v426 = vshrl.u32 %v425, 7
      %v427 = vsub.s32 0, %v426
      %v428 = vrot.slane %v423, %v427
      %v430 = vmul.f32 %v422, %v428
      %vm431 = vcmask 580608
      %v432 = vsel %vm431, %v430, 0.0
      %433 = vadd.xlane.f32.xlu0 %v432
      %v434 = vpop.xlane.xlu0 %433
      %v435 = vmul.f32 %v434, 0.015625
      %v436 = vmul.f32 %v430, %v430
      %v437 = vsel %vm431, %v436, 0.0
      %438 = vadd.xlane.f32.xlu0 %v437
      %v439 = vpop.xlane.xlu0 %438
      %v440 = vmul.f32 %v439, 0.015625
      %v441 = vmul.f32 %v435, %v435
      %v442 = vsub.f32 %v440, %v441
      %v443 = vmax.f32 %v442, 0.0
      %v444 = vadd.f32 %v443, 1e-05
      %v445 = vrsqrt.pop %v444
      %v446 = vld [vmem:[%s2] sm:$0xff]
      %v447 = vmul.f32 %v446, %v445
      %v448 = vld [vmem:[%s3] sm:$0xff]
      %v449 = vmul.f32 %v435, %v447
      %v450 = vsub.f32 %v448, %v449
      %452 = vset.pattern.permute.xlu0 0
      %453 = vperm.xlu0 %452, %v447
      %v454 = vpop.permute.xlu0 %453
      %v456 = vmul.f32 %v430, %v454
      %458 = vset.pattern.permute.xlu0 0
      %459 = vperm.xlu0 %458, %v450
      %v460 = vpop.permute.xlu0 %459
      %v462 = vadd.f32 %v456, %v460
      %v463 = vmul.f32 %v462, 0.2
      %v464 = vmax.f32 %v462, %v463
      %vm465 = vcmask 64512
      %466 = vst.msk [vmem:[%s222] sm:$0xff] %vm465, %v464
      %468 = vrot.lane.b32.xlu0 %v464, 127
      %v469 = vpop.permute.xlu0 %468
      %vm471 = vcmask 130112
      %472 = vst.msk [vmem:[%s222] sm:$0xff] %vm471, %v469
      %473 = vrot.lane.b32.xlu0 %v464, 126
      %v474 = vpop.permute.xlu0 %473
      %vm476 = vcmask 195712
      %477 = vst.msk [vmem:[%s222] sm:$0xff] %vm476, %v474
      %478 = vrot.lane.b32.xlu0 %v464, 125
      %v479 = vpop.permute.xlu0 %478
      %vm481 = vcmask 261312
      %482 = vst.msk [vmem:[%s222] sm:$0xff] %vm481, %v479
      %483 = vrot.lane.b32.xlu0 %v464, 124
      %v484 = vpop.permute.xlu0 %483
      %vm486 = vcmask 326912
      %487 = vst.msk [vmem:[%s222] sm:$0xff] %vm486, %v484
      %488 = vrot.lane.b32.xlu0 %v464, 123
      %v489 = vpop.permute.xlu0 %488
      %vm491 = vcmask 392512
      %492 = vst.msk [vmem:[%s222] sm:$0xff] %vm491, %v489
      %493 = vrot.lane.b32.xlu0 %v464, 122
      %v494 = vpop.permute.xlu0 %493
      %vm496 = vcmask 458112
      %497 = vst.msk [vmem:[%s222] sm:$0xff] %vm496, %v494
      %498 = vrot.lane.b32.xlu0 %v464, 121
      %v499 = vpop.permute.xlu0 %498
      %vm501 = vcmask 523712
      %502 = vst.msk [vmem:[%s222] sm:$0xff] %vm501, %v499
      %p503 = scmp.lt.s32.totalorder %s16, 1
      %s504 = scalar_select %p503, %s16, 1
      %s505 = smul.addr %s504, 8
      %s506 = scalar_lea.vmem %s5, %s505
      // Predicated region
      $region41: #{dblock_forward.1} parent=39 // pred_check
        %p507 = pneg %p144
      $region42: #{dblock_forward.1} parent=39 // pred_check_branch
        %509 = sbr.rel (%p507) target = $region44
      $region43: #{dblock_forward.1} parent=39 // pred_region
        _
      $region44: #{dblock_forward.1} parent=39 // pred_fallthru
        _
    $region40: #{dblock_forward.1} parent=5 // pred_fallthru
      _
    %p510 = scmp.le.s32.totalorder 2, %s11
    // Predicated region
    $region45: #{dblock_forward.1} parent=5 // pred_check
      %p511 = pneg %p510
    $region46: #{dblock_forward.1} parent=5 // pred_check_branch
      %513 = sbr.rel (%p511) target = $region48
    $region47: #{dblock_forward.1} parent=5 // pred_region
      %s514 = ssub.s32 %s11, 2
      // Predicated region
      $region49: #{dblock_forward.1} parent=47 // pred_check
        %p515 = pneg %p150
      $region50: #{dblock_forward.1} parent=47 // pred_check_branch
        %517 = sbr.rel (%p515) target = $region52
      $region51: #{dblock_forward.1} parent=47 // pred_region
        %p518 = scmp.lt.s32.totalorder %s17, 1
        %s519 = scalar_select %p518, %s17, 1
        %s520 = smul.addr %s519, 8
        %s521 = scalar_lea.vmem %s5, %s520
      $region52: #{dblock_forward.1} parent=47 // pred_fallthru
        _
    $region48: #{dblock_forward.1} parent=5 // pred_fallthru
      _
  $region6: #{dblock_forward.1} parent=0 // loop_footer
    %s15 = sadd.s32 1, %s11
  $region7: #{dblock_forward.1} parent=0 // loop_footer_branch
    %10 = sbr.rel target = $region3
  $region8: #{dblock_forward.1} parent=0 // loop_exit
    _

</llo_original>
